<compile_context>
chip_gen: v6e
topology: v6e:2x2x1
jax: 0.10.0
libtpu: 0.0.40
codegen_flags: <defaults>
</compile_context>

<pallas_src>
import functools

import jax
import jax.numpy as jnp
from jax import lax
from jax.experimental import pallas as pl
from jax.experimental.pallas import tpu as pltpu


def _round_up(x, m):
    return ((x + m - 1) // m) * m


def _fake_quant_weight_kernel(sz_ref, w_ref, o_ref, *, q_min, q_max):
    """Elementwise affine fake-quant of one weight tile, emitted in MXU dtype (bf16).

    sz_ref (SMEM): [s, 1/s, z]. Runs once over the whole weight (2-D grid over
    (N, K) tiles) so the round/clip work is NOT redone per M block.
    """
    s = sz_ref[0]
    inv_s = sz_ref[1]
    z = sz_ref[2]
    w = w_ref[...]
    q = jnp.clip(jnp.round(w * inv_s + z), q_min, q_max)
    o_ref[...] = ((q - z) * s).astype(o_ref.dtype)


def _matmul_bias_act_kernel(x_ref, w_ref, b_ref, o_ref, *, apply_relu):
    """Grid: (M//tm, N//tn, K//tk); reduction axis k is last.

    x tile (tm, tk) bf16, w tile (tn, tk) bf16 (already fake-quantized).
    dot_general contracts over K directly (no in-kernel transpose); f32 partials
    accumulate straight into the resident output block; bias + ReLU fused at last k.
    """
    k = pl.program_id(2)

    @pl.when(k == 0)
    def _():
        o_ref[...] = jnp.zeros_like(o_ref)

    o_ref[...] += lax.dot_general(
        x_ref[...], w_ref[...],
        dimension_numbers=(((1,), (1,)), ((), ())),
        preferred_element_type=jnp.float32)

    @pl.when(k == pl.num_programs(2) - 1)
    def _():
        out = o_ref[...] + b_ref[...]            # bias tile (1, tn) broadcasts
        if apply_relu:
            out = jnp.maximum(out, 0.0)
        o_ref[...] = out


def fused_linear_forward(x, weight, bias=None, *, w_bit=8, symmetric=False,
                         activation="relu", tm=256, tn=256, tk=512,
                         mxu_dtype=jnp.bfloat16):
    M, K = x.shape
    N, K2 = weight.shape
    assert K == K2

    weight = weight.astype(jnp.float32)
    x = x.astype(jnp.float32)

    # --- calc_qparams (glue: scalar reduction over the weight) ---
    w_min = jnp.min(weight)
    w_max = jnp.max(weight)
    if symmetric:
        q_max = float(2 ** (w_bit - 1) - 1)
        q_min = -q_max
        s = jnp.maximum(jnp.abs(w_min), jnp.abs(w_max)) / q_max
        s = jnp.maximum(s, 1e-8)                 # guard s == 0 (constant weight)
        z = jnp.zeros((), jnp.float32)
    else:
        q_max = float(2 ** w_bit - 1)
        q_min = 0.0
        s = (w_max - w_min) / q_max
        s = jnp.maximum(s, 1e-8)                 # guard s == 0 (constant weight)
        z = -jnp.round(w_min / s)
    inv_s = 1.0 / s
    sz = jnp.stack([s, inv_s, z]).astype(jnp.float32)

    # --- tile selection (clamp to problem size, keep (8,128) granularity) ---
    tm_eff = min(tm, _round_up(M, 8))
    tn_eff = min(tn, _round_up(N, 128))
    tk_eff = min(tk, _round_up(K, 128))
    M_pad = _round_up(M, tm_eff)
    N_pad = _round_up(N, tn_eff)
    K_pad = _round_up(K, tk_eff)

    x_p = x if (M_pad, K_pad) == (M, K) else jnp.pad(x, ((0, M_pad - M), (0, K_pad - K)))
    w_p = weight if (N_pad, K_pad) == (N, K) else jnp.pad(weight, ((0, N_pad - N), (0, K_pad - K)))
    if bias is None:
        bias = jnp.zeros((N,), jnp.float32)
    b_p = bias.astype(jnp.float32)
    if N_pad != N:
        b_p = jnp.pad(b_p, (0, N_pad - N))
    b2d = b_p.reshape(1, N_pad)

    # --- pass 1: fake-quantize the weight once, store in bf16 [N, K] ---
    fq_kernel = functools.partial(_fake_quant_weight_kernel, q_min=q_min, q_max=q_max)
    w_fq = pl.pallas_call(
        fq_kernel,
        out_shape=jax.ShapeDtypeStruct((N_pad, K_pad), mxu_dtype),
        grid_spec=pltpu.PrefetchScalarGridSpec(
            num_scalar_prefetch=0,
            grid=(N_pad // tn_eff, K_pad // tk_eff),
            in_specs=[
                pl.BlockSpec(memory_space=pltpu.MemorySpace.SMEM),      # [s, 1/s, z]
                pl.BlockSpec((tn_eff, tk_eff), lambda j, k: (j, k)),    # weight
            ],
            out_specs=pl.BlockSpec((tn_eff, tk_eff), lambda j, k: (j, k)),
        ),
        compiler_params=pltpu.CompilerParams(
            dimension_semantics=("parallel", "parallel"),
            vmem_limit_bytes=32 * 1024 * 1024),
    )(sz, w_p)

    # bf16 LHS: halves x DMA bytes (x is re-streamed once per N tile); f32 accumulation.
    x_mxu = x_p.astype(mxu_dtype)

    # --- pass 2: tiled matmul + bias + activation ---
    mm_kernel = functools.partial(_matmul_bias_act_kernel,
                                  apply_relu=(activation == "relu"))
    grid = (M_pad // tm_eff, N_pad // tn_eff, K_pad // tk_eff)
    out = pl.pallas_call(
        mm_kernel,
        out_shape=jax.ShapeDtypeStruct((M_pad, N_pad), jnp.float32),
        grid_spec=pltpu.PrefetchScalarGridSpec(
            num_scalar_prefetch=0,
            grid=grid,
            in_specs=[
                pl.BlockSpec((tm_eff, tk_eff), lambda i, j, k: (i, k)),  # x (bf16)
                pl.BlockSpec((tn_eff, tk_eff), lambda i, j, k: (j, k)),  # w_fq (bf16)
                pl.BlockSpec((1, tn_eff), lambda i, j, k: (0, j)),       # bias (f32)
            ],
            out_specs=pl.BlockSpec((tm_eff, tn_eff), lambda i, j, k: (i, j)),
        ),
        compiler_params=pltpu.CompilerParams(
            dimension_semantics=("parallel", "parallel", "arbitrary"),
            vmem_limit_bytes=32 * 1024 * 1024),
    )(x_mxu, w_fq, b2d)

    if (M_pad, N_pad) != (M, N):
        out = out[:M, :N]
    return out, (s, z)


if __name__ == "__main__":
    key = jax.random.PRNGKey(0)
    B, in_features, out_features = 16, 256, 128
    kx, kw, kb = jax.random.split(key, 3)

    # deterministic parameter init (nn.Linear-style uniform(-1/sqrt(fan_in), 1/sqrt(fan_in)))
    bound = 1.0 / (in_features ** 0.5)
    x = jax.random.normal(kx, (B, in_features), dtype=jnp.float32)
    weight = jax.random.uniform(kw, (out_features, in_features),
                                minval=-bound, maxval=bound, dtype=jnp.float32)
    bias = jax.random.uniform(kb, (out_features,),
                              minval=-bound, maxval=bound, dtype=jnp.float32)

    out, (s, z) = fused_linear_forward(x, weight, bias, w_bit=8,
                                       symmetric=False, activation="relu")
    out = jax.block_until_ready(out)

    # pure-JAX reference for the same training-mode forward (bf16 MXU inputs, f32 accum)
    q = jnp.clip(jnp.round(weight * (1.0 / s) + z), 0.0, 255.0)
    w_fq_ref = ((q - z) * s).astype(jnp.bfloat16).astype(jnp.float32)
    x_ref = x.astype(jnp.bfloat16).astype(jnp.float32)
    ref = jnp.maximum(x_ref @ w_fq_ref.T + bias, 0.0)
    assert jnp.allclose(out, ref, atol=2e-3, rtol=2e-3), "mismatch vs reference"

    # state side-effect of the first training call (apply_ema was False):
    #   act_range <- get_range(out); apply_ema <- True
    act_range = jnp.stack([out.min(), out.max()])
    jax.block_until_ready(act_range)
    # TODO(synk): EMA act_range tracking / activation fake-quant branch (apply_ema True)
    # is stateful across training steps and is left to the host-side training loop.

    print("KERNEL_OK")
</pallas_src>

<mosaic_0001>
module attributes {stable_mosaic.version = 11 : i64} {
  func.func @_fake_quant_weight_kernel(%arg0: i32, %arg1: i32, %arg2: memref<3xf32, #tpu.memory_space<smem>>, %arg3: memref<128x256xf32, #tpu.memory_space<vmem>>, %arg4: memref<128x256xbf16, #tpu.memory_space<vmem>>) attributes {dimension_semantics = [#tpu.dimension_semantics<parallel>, #tpu.dimension_semantics<parallel>], iteration_bounds = array<i64: 1, 1>, scalar_prefetch = 0 : i64, scratch_operands = 0 : i64, tpu.core_type = #tpu.core_type<tc>, window_params = [{transform_indices = @transform_0, window_bounds = array<i64: 3>}, {transform_indices = @transform_1, window_bounds = array<i64: 128, 256>}, {transform_indices = @transform_2, window_bounds = array<i64: 128, 256>}]} {
    %c0 = arith.constant 0 : index
    %0 = memref.load %arg2[%c0] : memref<3xf32, #tpu.memory_space<smem>>
    %c1 = arith.constant 1 : index
    %1 = memref.load %arg2[%c1] : memref<3xf32, #tpu.memory_space<smem>>
    %c2 = arith.constant 2 : index
    %2 = memref.load %arg2[%c2] : memref<3xf32, #tpu.memory_space<smem>>
    %c0_0 = arith.constant 0 : index
    %c0_1 = arith.constant 0 : index
    %3 = vector.load %arg3[%c0_0, %c0_1] : memref<128x256xf32, #tpu.memory_space<vmem>>, vector<128x256xf32>
    %4 = vector.broadcast %1 : f32 to vector<128x256xf32>
    %5 = arith.mulf %3, %4 : vector<128x256xf32>
    %6 = vector.broadcast %2 : f32 to vector<128x256xf32>
    %7 = arith.addf %5, %6 : vector<128x256xf32>
    %8 = math.roundeven %7 : vector<128x256xf32>
    %cst = arith.constant 0.000000e+00 : f32
    %cst_2 = arith.constant 2.550000e+02 : f32
    %9 = vector.broadcast %cst : f32 to vector<128x256xf32>
    %10 = arith.maximumf %9, %8 : vector<128x256xf32>
    %11 = vector.broadcast %cst_2 : f32 to vector<128x256xf32>
    %12 = arith.minimumf %11, %10 : vector<128x256xf32>
    %13 = vector.broadcast %2 : f32 to vector<128x256xf32>
    %14 = arith.subf %12, %13 : vector<128x256xf32>
    %15 = vector.broadcast %0 : f32 to vector<128x256xf32>
    %16 = arith.mulf %14, %15 : vector<128x256xf32>
    %17 = arith.truncf %16 : vector<128x256xf32> to vector<128x256xbf16>
    %c0_3 = arith.constant 0 : index
    %c0_4 = arith.constant 0 : index
    %18 = vector.load %arg4[%c0_3, %c0_4] : memref<128x256xbf16, #tpu.memory_space<vmem>>, vector<128x256xbf16>
    tpu.vector_store %arg4[%c0_3, %c0_4], %17 {strides = array<i32>} : memref<128x256xbf16, #tpu.memory_space<vmem>>, vector<128x256xbf16>,
    return
  }
  func.func @transform_0(%arg0: i32, %arg1: i32) -> i32 {
    %c0_i32 = arith.constant 0 : i32
    %c0_i32_0 = arith.constant 0 : i32
    return %c0_i32 : i32
  }
  func.func @transform_1(%arg0: i32, %arg1: i32) -> (i32, i32) {
    %c0_i32 = arith.constant 0 : i32
    return %arg0, %arg1 : i32, i32
  }
  func.func @transform_2(%arg0: i32, %arg1: i32) -> (i32, i32) {
    %c0_i32 = arith.constant 0 : i32
    return %arg0, %arg1 : i32, i32
  }
}

</mosaic_0001>

<llo_original>
// kernel: tpu_custom_call.1
$region0: #{tpu_custom_call.1}
  #allocation0 [shape = 'u32[]', space=smem, size = 0x4, offset = 0x4, fixed_abs, tag = 'smem constant byte address 0x4 - core index']
  #allocation1 [shape = 'u32[144,128]{1,0:T(1,128)}', space=vmem, size = 0x12000, scoped, tag = 'internal scratch']
  %s0 = inlined_call_operand.hbm [shape: f32[3], index: 0, kind: input, shape index: {}]
  %s1 = inlined_call_operand.hbm [shape: f32[128,256], index: 1, kind: input, shape index: {}]
  %s2 = inlined_call_operand.hbm [shape: bf16[128,256], index: 2, kind: output, shape index: {}]
  %s3 = sld [smem:[#allocation0]]
  $region26: #{tpu_custom_call.1} parent=0
    _
  %s5 = ssub.s32 1, %s3
  %s6 = scalar_select 0, %s5, %s3
  $region1: #{tpu_custom_call.1} parent=0
    #allocation2 [shape = 'u8[512]{0}', space=smem, size = 0x200, scoped, tag = 'input window, operand 0, single buffered']
    #allocation3 [shape = 's32[1]{0}', space=sflag, size = 0x4, scoped, tag = 'scoped memory for tpu_custom_call.1']
    #allocation4 [shape = 's32[1]{0}', space=sflag, size = 0x4, scoped, tag = 'scoped memory for tpu_custom_call.1']
    #allocation5 [shape = 's32[1]{0}', space=sflag, size = 0x4, scoped, tag = 'scoped memory for tpu_custom_call.1']
    #allocation6 [shape = 'u8[131072]{0}', space=vmem, size = 0x20000, scoped, tag = 'input window, operand 1, single buffered']
    #allocation7 [shape = 'u8[65536]{0}', space=vmem, size = 0x10000, scoped, tag = 'output window, operand 0, single buffered']
    %7 = vsyncpa [#allocation5], 0
    %8 = vsyncpa [#allocation3], 0
    %9 = vsyncpa [#allocation4], 0
    // Predicated region
    $region2: #{tpu_custom_call.1} parent=1 // pred_check
      _
    $region3: #{tpu_custom_call.1} parent=1 // pred_check_branch
      %11 = sbr.rel (0) target = $region5
    $region4: #{tpu_custom_call.1} parent=1 // pred_region
      %s13 = ssub.s32 16, 16
      %14 = vsyncadd [#allocation5], %s13
      %17 = dma.hbm_to_smem %s0, 16, [#allocation2], [#allocation5]
    $region5: #{tpu_custom_call.1} parent=1 // pred_fallthru
      _
    // Predicated region
    $region6: #{tpu_custom_call.1} parent=1 // pred_check
      _
    $region7: #{tpu_custom_call.1} parent=1 // pred_check_branch
      %19 = sbr.rel (0) target = $region9
    $region8: #{tpu_custom_call.1} parent=1 // pred_region
      %s21 = ssub.s32 4096, 4096
      %22 = vsyncadd [#allocation3], %s21
      %s23 = sshll.u32 [#allocation6], 4
      %s24 = int_to_ptr.vmem [resolvable:$true] %s23
      %29 = dma.hbm_to_vmem [thread:$0]  %s1, 4096, %s24, [#allocation3], 256, 256, 16
    $region9: #{tpu_custom_call.1} parent=1 // pred_fallthru
      _
    // Predicated region
    $region10: #{tpu_custom_call.1} parent=1 // pred_check
      _
    $region11: #{tpu_custom_call.1} parent=1 // pred_check_branch
      %31 = sbr.rel (0) target = $region13
    $region12: #{tpu_custom_call.1} parent=1 // pred_region
      %32 = dma.done [#allocation5], 16
    $region13: #{tpu_custom_call.1} parent=1 // pred_fallthru
      _
    // Predicated region
    $region14: #{tpu_custom_call.1} parent=1 // pred_check
      _
    $region15: #{tpu_custom_call.1} parent=1 // pred_check_branch
      %34 = sbr.rel (0) target = $region17
    $region16: #{tpu_custom_call.1} parent=1 // pred_region
      %35 = dma.done [#allocation3], 4096
    $region17: #{tpu_custom_call.1} parent=1 // pred_fallthru
      _
    %36 = sfence
    %s37 = sld [smem:[#allocation2]]
    %s38 = sld [smem:[#allocation2 + $0x1]]
    %s39 = sld [smem:[#allocation2 + $0x2]]
    %v40 = vld [vmem:[#allocation6] sm:$0xff]
    %v41 = vld [vmem:[#allocation6 + $0x8] sm:$0xff]
    %v42 = vld [vmem:[#allocation6 + $0x10] sm:$0xff]
    %v43 = vld [vmem:[#allocation6 + $0x18] sm:$0xff]
    %v44 = vld [vmem:[#allocation6 + $0x20] sm:$0xff]
    %v45 = vld [vmem:[#allocation6 + $0x28] sm:$0xff]
    %v46 = vld [vmem:[#allocation6 + $0x30] sm:$0xff]
    %v47 = vld [vmem:[#allocation6 + $0x38] sm:$0xff]
    %v48 = vld [vmem:[#allocation6 + $0x40] sm:$0xff]
    %v49 = vld [vmem:[#allocation6 + $0x48] sm:$0xff]
    %v50 = vld [vmem:[#allocation6 + $0x50] sm:$0xff]
    %v51 = vld [vmem:[#allocation6 + $0x58] sm:$0xff]
    %v52 = vld [vmem:[#allocation6 + $0x60] sm:$0xff]
    %v53 = vld [vmem:[#allocation6 + $0x68] sm:$0xff]
    %v54 = vld [vmem:[#allocation6 + $0x70] sm:$0xff]
    %v55 = vld [vmem:[#allocation6 + $0x78] sm:$0xff]
    %v56 = vld [vmem:[#allocation6 + $0x80] sm:$0xff]
    %v57 = vld [vmem:[#allocation6 + $0x88] sm:$0xff]
    %v58 = vld [vmem:[#allocation6 + $0x90] sm:$0xff]
    %v59 = vld [vmem:[#allocation6 + $0x98] sm:$0xff]
    %v60 = vld [vmem:[#allocation6 + $0xa0] sm:$0xff]
    %v61 = vld [vmem:[#allocation6 + $0xa8] sm:$0xff]
    %v62 = vld [vmem:[#allocation6 + $0xb0] sm:$0xff]
    %v63 = vld [vmem:[#allocation6 + $0xb8] sm:$0xff]
    %v64 = vld [vmem:[#allocation6 + $0xc0] sm:$0xff]
    %v65 = vld [vmem:[#allocation6 + $0xc8] sm:$0xff]
    %v66 = vld [vmem:[#allocation6 + $0xd0] sm:$0xff]
    %v67 = vld [vmem:[#allocation6 + $0xd8] sm:$0xff]
    %v68 = vld [vmem:[#allocation6 + $0xe0] sm:$0xff]
    %v69 = vld [vmem:[#allocation6 + $0xe8] sm:$0xff]
    %v70 = vld [vmem:[#allocation6 + $0xf0] sm:$0xff]
    %v71 = vld [vmem:[#allocation6 + $0xf8] sm:$0xff]
    %v72 = vstv %s38
    %v73 = vmul.f32 %v40, %v72
    %v74 = vmul.f32 %v41, %v72
    %v75 = vmul.f32 %v42, %v72
    %v76 = vmul.f32 %v43, %v72
    %v77 = vmul.f32 %v44, %v72
    %v78 = vmul.f32 %v45, %v72
    %v79 = vmul.f32 %v46, %v72
    %v80 = vmul.f32 %v47, %v72
    %v81 = vmul.f32 %v48, %v72
    %v82 = vmul.f32 %v49, %v72
    %v83 = vmul.f32 %v50, %v72
    %v84 = vmul.f32 %v51, %v72
    %v85 = vmul.f32 %v52, %v72
    %v86 = vmul.f32 %v53, %v72
    %v87 = vmul.f32 %v54, %v72
    %v88 = vmul.f32 %v55, %v72
    %v89 = vmul.f32 %v56, %v72
    %v90 = vmul.f32 %v57, %v72
    %v91 = vmul.f32 %v58, %v72
    %v92 = vmul.f32 %v59, %v72
    %v93 = vmul.f32 %v60, %v72
    %v94 = vmul.f32 %v61, %v72
    %v95 = vmul.f32 %v62, %v72
    %v96 = vmul.f32 %v63, %v72
    %v97 = vmul.f32 %v64, %v72
    %v98 = vmul.f32 %v65, %v72
    %v99 = vmul.f32 %v66, %v72
    %v100 = vmul.f32 %v67, %v72
    %v101 = vmul.f32 %v68, %v72
    %v102 = vmul.f32 %v69, %v72
    %v103 = vmul.f32 %v70, %v72
    %v104 = vmul.f32 %v71, %v72
    %v105 = vstv %s39
    %v106 = vadd.f32 %v73, %v105
    %v107 = vadd.f32 %v74, %v105
    %v108 = vadd.f32 %v75, %v105
    %v109 = vadd.f32 %v76, %v105
    %v110 = vadd.f32 %v77, %v105
    %v111 = vadd.f32 %v78, %v105
    %v112 = vadd.f32 %v79, %v105
    %v113 = vadd.f32 %v80, %v105
    %v114 = vadd.f32 %v81, %v105
    %v115 = vadd.f32 %v82, %v105
    %v116 = vadd.f32 %v83, %v105
    %v117 = vadd.f32 %v84, %v105
    %v118 = vadd.f32 %v85, %v105
    %v119 = vadd.f32 %v86, %v105
    %v120 = vadd.f32 %v87, %v105
    %v121 = vadd.f32 %v88, %v105
    %v122 = vadd.f32 %v89, %v105
    %v123 = vadd.f32 %v90, %v105
    %v124 = vadd.f32 %v91, %v105
    %v125 = vadd.f32 %v92, %v105
    %v126 = vadd.f32 %v93, %v105
    %v127 = vadd.f32 %v94, %v105
    %v128 = vadd.f32 %v95, %v105
    %v129 = vadd.f32 %v96, %v105
    %v130 = vadd.f32 %v97, %v105
    %v131 = vadd.f32 %v98, %v105
    %v132 = vadd.f32 %v99, %v105
    %v133 = vadd.f32 %v100, %v105
    %v134 = vadd.f32 %v101, %v105
    %v135 = vadd.f32 %v102, %v105
    %v136 = vadd.f32 %v103, %v105
    %v137 = vadd.f32 %v104, %v105
    %v138 = vround.ne.pseudo %v106
    %v139 = vround.ne.pseudo %v107
    %v140 = vround.ne.pseudo %v108
    %v141 = vround.ne.pseudo %v109
    %v142 = vround.ne.pseudo %v110
    %v143 = vround.ne.pseudo %v111
    %v144 = vround.ne.pseudo %v112
    %v145 = vround.ne.pseudo %v113
    %v146 = vround.ne.pseudo %v114
    %v147 = vround.ne.pseudo %v115
    %v148 = vround.ne.pseudo %v116
    %v149 = vround.ne.pseudo %v117
    %v150 = vround.ne.pseudo %v118
    %v151 = vround.ne.pseudo %v119
    %v152 = vround.ne.pseudo %v120
    %v153 = vround.ne.pseudo %v121
    %v154 = vround.ne.pseudo %v122
    %v155 = vround.ne.pseudo %v123
    %v156 = vround.ne.pseudo %v124
    %v157 = vround.ne.pseudo %v125
    %v158 = vround.ne.pseudo %v126
    %v159 = vround.ne.pseudo %v127
    %v160 = vround.ne.pseudo %v128
    %v161 = vround.ne.pseudo %v129
    %v162 = vround.ne.pseudo %v130
    %v163 = vround.ne.pseudo %v131
    %v164 = vround.ne.pseudo %v132
    %v165 = vround.ne.pseudo %v133
    %v166 = vround.ne.pseudo %v134
    %v167 = vround.ne.pseudo %v135
    %v168 = vround.ne.pseudo %v136
    %v169 = vround.ne.pseudo %v137
    %v170 = vmax.f32 %v138, 0.0
    %v171 = vmax.f32 %v139, 0.0
    %v172 = vmax.f32 %v140, 0.0
    %v173 = vmax.f32 %v141, 0.0
    %v174 = vmax.f32 %v142, 0.0
    %v175 = vmax.f32 %v143, 0.0
    %v176 = vmax.f32 %v144, 0.0
    %v177 = vmax.f32 %v145, 0.0
    %v178 = vmax.f32 %v146, 0.0
    %v179 = vmax.f32 %v147, 0.0
    %v180 = vmax.f32 %v148, 0.0
    %v181 = vmax.f32 %v149, 0.0
    %v182 = vmax.f32 %v150, 0.0
    %v183 = vmax.f32 %v151, 0.0
    %v184 = vmax.f32 %v152, 0.0
    %v185 = vmax.f32 %v153, 0.0
    %v186 = vmax.f32 %v154, 0.0
    %v187 = vmax.f32 %v155, 0.0
    %v188 = vmax.f32 %v156, 0.0
    %v189 = vmax.f32 %v157, 0.0
    %v190 = vmax.f32 %v158, 0.0
    %v191 = vmax.f32 %v159, 0.0
    %v192 = vmax.f32 %v160, 0.0
    %v193 = vmax.f32 %v161, 0.0
    %v194 = vmax.f32 %v162, 0.0
    %v195 = vmax.f32 %v163, 0.0
    %v196 = vmax.f32 %v164, 0.0
    %v197 = vmax.f32 %v165, 0.0
    %v198 = vmax.f32 %v166, 0.0
    %v199 = vmax.f32 %v167, 0.0
    %v200 = vmax.f32 %v168, 0.0
    %v201 = vmax.f32 %v169, 0.0
    %v202 = vmin.f32 %v170, 255.0
    %v203 = vmin.f32 %v171, 255.0
    %v204 = vmin.f32 %v172, 255.0
    %v205 = vmin.f32 %v173, 255.0
    %v206 = vmin.f32 %v174, 255.0
    %v207 = vmin.f32 %v175, 255.0
    %v208 = vmin.f32 %v176, 255.0
    %v209 = vmin.f32 %v177, 255.0
    %v210 = vmin.f32 %v178, 255.0
    %v211 = vmin.f32 %v179, 255.0
    %v212 = vmin.f32 %v180, 255.0
    %v213 = vmin.f32 %v181, 255.0
    %v214 = vmin.f32 %v182, 255.0
    %v215 = vmin.f32 %v183, 255.0
    %v216 = vmin.f32 %v184, 255.0
    %v217 = vmin.f32 %v185, 255.0
    %v218 = vmin.f32 %v186, 255.0
    %v219 = vmin.f32 %v187, 255.0
    %v220 = vmin.f32 %v188, 255.0
    %v221 = vmin.f32 %v189, 255.0
    %v222 = vmin.f32 %v190, 255.0
    %v223 = vmin.f32 %v191, 255.0
    %v224 = vmin.f32 %v192, 255.0
    %v225 = vmin.f32 %v193, 255.0
    %v226 = vmin.f32 %v194, 255.0
    %v227 = vmin.f32 %v195, 255.0
    %v228 = vmin.f32 %v196, 255.0
    %v229 = vmin.f32 %v197, 255.0
    %v230 = vmin.f32 %v198, 255.0
    %v231 = vmin.f32 %v199, 255.0
    %v232 = vmin.f32 %v200, 255.0
    %v233 = vmin.f32 %v201, 255.0
    %v234 = vsub.f32 %v202, %v105
    %v235 = vsub.f32 %v203, %v105
    %v236 = vsub.f32 %v204, %v105
    %v237 = vsub.f32 %v205, %v105
    %v238 = vsub.f32 %v206, %v105
    %v239 = vsub.f32 %v207, %v105
    %v240 = vsub.f32 %v208, %v105
    %v241 = vsub.f32 %v209, %v105
    %v242 = vsub.f32 %v210, %v105
    %v243 = vsub.f32 %v211, %v105
    %v244 = vsub.f32 %v212, %v105
    %v245 = vsub.f32 %v213, %v105
    %v246 = vsub.f32 %v214, %v105
    %v247 = vsub.f32 %v215, %v105
    %v248 = vsub.f32 %v216, %v105
    %v249 = vsub.f32 %v217, %v105
    %v250 = vsub.f32 %v218, %v105
    %v251 = vsub.f32 %v219, %v105
    %v252 = vsub.f32 %v220, %v105
    %v253 = vsub.f32 %v221, %v105
    %v254 = vsub.f32 %v222, %v105
    %v255 = vsub.f32 %v223, %v105
    %v256 = vsub.f32 %v224, %v105
    %v257 = vsub.f32 %v225, %v105
    %v258 = vsub.f32 %v226, %v105
    %v259 = vsub.f32 %v227, %v105
    %v260 = vsub.f32 %v228, %v105
    %v261 = vsub.f32 %v229, %v105
    %v262 = vsub.f32 %v230, %v105
    %v263 = vsub.f32 %v231, %v105
    %v264 = vsub.f32 %v232, %v105
    %v265 = vsub.f32 %v233, %v105
    %v266 = vstv %s37
    %v267 = vmul.f32 %v234, %v266
    %v268 = vmul.f32 %v235, %v266
    %v269 = vmul.f32 %v236, %v266
    %v270 = vmul.f32 %v237, %v266
    %v271 = vmul.f32 %v238, %v266
    %v272 = vmul.f32 %v239, %v266
    %v273 = vmul.f32 %v240, %v266
    %v274 = vmul.f32 %v241, %v266
    %v275 = vmul.f32 %v242, %v266
    %v276 = vmul.f32 %v243, %v266
    %v277 = vmul.f32 %v244, %v266
    %v278 = vmul.f32 %v245, %v266
    %v279 = vmul.f32 %v246, %v266
    %v280 = vmul.f32 %v247, %v266
    %v281 = vmul.f32 %v248, %v266
    %v282 = vmul.f32 %v249, %v266
    %v283 = vmul.f32 %v250, %v266
    %v284 = vmul.f32 %v251, %v266
    %v285 = vmul.f32 %v252, %v266
    %v286 = vmul.f32 %v253, %v266
    %v287 = vmul.f32 %v254, %v266
    %v288 = vmul.f32 %v255, %v266
    %v289 = vmul.f32 %v256, %v266
    %v290 = vmul.f32 %v257, %v266
    %v291 = vmul.f32 %v258, %v266
    %v292 = vmul.f32 %v259, %v266
    %v293 = vmul.f32 %v260, %v266
    %v294 = vmul.f32 %v261, %v266
    %v295 = vmul.f32 %v262, %v266
    %v296 = vmul.f32 %v263, %v266
    %v297 = vmul.f32 %v264, %v266
    %v298 = vmul.f32 %v265, %v266
    %v299 = vpack.c.bf16 %v269, %v267
    %v300 = vpack.c.bf16 %v270, %v268
    %v301 = vpack.c.bf16 %v273, %v271
    %v302 = vpack.c.bf16 %v274, %v272
    %v303 = vpack.c.bf16 %v277, %v275
    %v304 = vpack.c.bf16 %v278, %v276
    %v305 = vpack.c.bf16 %v281, %v279
    %v306 = vpack.c.bf16 %v282, %v280
    %v307 = vpack.c.bf16 %v285, %v283
    %v308 = vpack.c.bf16 %v286, %v284
    %v309 = vpack.c.bf16 %v289, %v287
    %v310 = vpack.c.bf16 %v290, %v288
    %v311 = vpack.c.bf16 %v293, %v291
    %v312 = vpack.c.bf16 %v294, %v292
    %v313 = vpack.c.bf16 %v297, %v295
    %v314 = vpack.c.bf16 %v298, %v296
    %v331 = vunpack.c.l.b16 %v299
    %v332 = vunpack.c.l.b16 %v300
    %v333 = vunpack.c.h.b16 %v299
    %v334 = vunpack.c.h.b16 %v300
    %v335 = vunpack.c.l.b16 %v301
    %v336 = vunpack.c.l.b16 %v302
    %v337 = vunpack.c.h.b16 %v301
    %v338 = vunpack.c.h.b16 %v302
    %v339 = vunpack.c.l.b16 %v303
    %v340 = vunpack.c.l.b16 %v304
    %v341 = vunpack.c.h.b16 %v303
    %v342 = vunpack.c.h.b16 %v304
    %v343 = vunpack.c.l.b16 %v305
    %v344 = vunpack.c.l.b16 %v306
    %v345 = vunpack.c.h.b16 %v305
    %v346 = vunpack.c.h.b16 %v306
    %v347 = vunpack.c.l.b16 %v307
    %v348 = vunpack.c.l.b16 %v308
    %v349 = vunpack.c.h.b16 %v307
    %v350 = vunpack.c.h.b16 %v308
    %v351 = vunpack.c.l.b16 %v309
    %v352 = vunpack.c.l.b16 %v310
    %v353 = vunpack.c.h.b16 %v309
    %v354 = vunpack.c.h.b16 %v310
    %v355 = vunpack.c.l.b16 %v311
    %v356 = vunpack.c.l.b16 %v312
    %v357 = vunpack.c.h.b16 %v311
    %v358 = vunpack.c.h.b16 %v312
    %v359 = vunpack.c.l.b16 %v313
    %v360 = vunpack.c.l.b16 %v314
    %v361 = vunpack.c.h.b16 %v313
    %v362 = vunpack.c.h.b16 %v314
    %v363 = vpack.c.b16 %v332, %v331
    %v364 = vpack.c.b16 %v334, %v333
    %v365 = vpack.c.b16 %v336, %v335
    %v366 = vpack.c.b16 %v338, %v337
    %v367 = vpack.c.b16 %v340, %v339
    %v368 = vpack.c.b16 %v342, %v341
    %v369 = vpack.c.b16 %v344, %v343
    %v370 = vpack.c.b16 %v346, %v345
    %v371 = vpack.c.b16 %v348, %v347
    %v372 = vpack.c.b16 %v350, %v349
    %v373 = vpack.c.b16 %v352, %v351
    %v374 = vpack.c.b16 %v354, %v353
    %v375 = vpack.c.b16 %v356, %v355
    %v376 = vpack.c.b16 %v358, %v357
    %v377 = vpack.c.b16 %v360, %v359
    %v378 = vpack.c.b16 %v362, %v361
    %395 = vst [vmem:[#allocation7] sm:$0xff] %v363
    %396 = vst [vmem:[#allocation7 + $0x8] sm:$0xff] %v364
    %397 = vst [vmem:[#allocation7 + $0x10] sm:$0xff] %v365
    %398 = vst [vmem:[#allocation7 + $0x18] sm:$0xff] %v366
    %399 = vst [vmem:[#allocation7 + $0x20] sm:$0xff] %v367
    %400 = vst [vmem:[#allocation7 + $0x28] sm:$0xff] %v368
    %401 = vst [vmem:[#allocation7 + $0x30] sm:$0xff] %v369
    %402 = vst [vmem:[#allocation7 + $0x38] sm:$0xff] %v370
    %403 = vst [vmem:[#allocation7 + $0x40] sm:$0xff] %v371
    %404 = vst [vmem:[#allocation7 + $0x48] sm:$0xff] %v372
    %405 = vst [vmem:[#allocation7 + $0x50] sm:$0xff] %v373
    %406 = vst [vmem:[#allocation7 + $0x58] sm:$0xff] %v374
    %407 = vst [vmem:[#allocation7 + $0x60] sm:$0xff] %v375
    %408 = vst [vmem:[#allocation7 + $0x68] sm:$0xff] %v376
    %409 = vst [vmem:[#allocation7 + $0x70] sm:$0xff] %v377
    %410 = vst [vmem:[#allocation7 + $0x78] sm:$0xff] %v378
    // Predicated region
    $region18: #{tpu_custom_call.1} parent=1 // pred_check
      _
    $region19: #{tpu_custom_call.1} parent=1 // pred_check_branch
      %412 = sbr.rel (0) target = $region21
    $region20: #{tpu_custom_call.1} parent=1 // pred_region
      %s414 = ssub.s32 2048, 2048
      %415 = vsyncadd [#allocation4], %s414
      %s416 = sshll.u32 [#allocation7], 4
      %s417 = int_to_ptr.vmem [resolvable:$true] %s416
      %422 = dma.vmem_to_hbm [thread:$0]  %s417, 2048, %s2, [#allocation4], 128, 128, 8
    $region21: #{tpu_custom_call.1} parent=1 // pred_fallthru
      _
    // Predicated region
    $region22: #{tpu_custom_call.1} parent=1 // pred_check
      _
    $region23: #{tpu_custom_call.1} parent=1 // pred_check_branch
      %424 = sbr.rel (0) target = $region25
    $region24: #{tpu_custom_call.1} parent=1 // pred_region
      %425 = dma.done [#allocation4], 2048
    $region25: #{tpu_custom_call.1} parent=1 // pred_fallthru
      _
    %426 = vsyncpa [#allocation3], 1
    %427 = vsyncpa [#allocation4], 1
    %428 = vsyncpa [#allocation5], 1

</llo_original>
